<compile_context>
chip_gen: v6e
topology: v6e:2x2x1
jax: 0.10.0
libtpu: 0.0.40
codegen_flags: <defaults>
</compile_context>

<pallas_src>
import functools

import jax
import jax.numpy as jnp
from jax.experimental import pallas as pl
from jax.experimental.pallas import tpu as pltpu

NEG_SLOPE = 0.2      # GATConv default LeakyReLU negative slope
MASK_SCALE = 1e9     # additive mask magnitude (exp underflows to exactly 0 in f32)


def gat_attn_kernel(adj_ref, h_ref, ssrc_ref, sdst_ref, b_ref, out_ref,
                    m_sc, l_sc, acc_sc, *, heads, out_ch, concat, activation):
    """Online-softmax GAT attention + aggregation for one (row-tile, source-tile) grid cell.

    adj_ref : [TM, TK]  int8, adj[i, j] = 1 iff edge j -> i (self-loops included)
    h_ref   : [heads, TK, out_ch] bf16, projected source-node features (per-head slabs)
    ssrc_ref: [heads, TK] f32,  a_src . h_j
    sdst_ref: [TM, heads] f32,  a_dst . h_i
    b_ref   : [1, out_dim] f32 bias
    out_ref : [TM, out_dim]
    scratch : m/l [heads, TM, 1] f32 and acc [heads, TM, out_ch] f32 (running softmax state)
    """
    k = pl.program_id(1)
    nk = pl.num_programs(1)

    @pl.when(k == 0)
    def _():
        m_sc[...] = jnp.full(m_sc.shape, -jnp.inf, jnp.float32)
        l_sc[...] = jnp.zeros(l_sc.shape, jnp.float32)
        acc_sc[...] = jnp.zeros(acc_sc.shape, jnp.float32)

    # Additive mask: 0 where an edge exists, -1e9 otherwise (single add on the N^2 path).
    neg_mask = (adj_ref[...].astype(jnp.float32) - 1.0) * MASK_SCALE      # [TM, TK]
    sdst = sdst_ref[...]                                                   # [TM, heads]
    ssrc = ssrc_ref[...]                                                   # [heads, TK]

    for hd in range(heads):                      # heads is tiny & static (2 / 1)
        scores = sdst[:, hd:hd + 1] + ssrc[hd:hd + 1, :]                   # [TM, TK]
        scores = jnp.maximum(scores, NEG_SLOPE * scores)                   # LeakyReLU(0.2)
        scores = scores + neg_mask
        m_prev = m_sc[hd]                                                  # [TM, 1]
        m_new = jnp.maximum(m_prev, jnp.max(scores, axis=-1, keepdims=True))
        a = jnp.exp(m_prev - m_new)                                        # rescale factor
        p = jnp.exp(scores - m_new)                                        # masked entries -> 0
        l_sc[hd] = a * l_sc[hd] + jnp.sum(p, axis=-1, keepdims=True)
        acc_sc[hd] = a * acc_sc[hd] + jnp.dot(
            p.astype(jnp.bfloat16), h_ref[hd], preferred_element_type=jnp.float32)
        m_sc[hd] = m_new

    @pl.when(k == nk - 1)
    def _():
        outs = []
        for hd in range(heads):
            denom = jnp.maximum(l_sc[hd], 1e-12)       # isolated-node guard
            outs.append(acc_sc[hd] * pl.reciprocal(denom, approx=True))
        if concat:
            out = jnp.concatenate(outs, axis=-1)
        else:
            out = outs[0]
            for t in outs[1:]:
                out = out + t
            out = out * (1.0 / heads)
        out = out + b_ref[...]
        if activation == "elu":
            out = jnp.where(out > 0, out, jnp.exp(out) - 1.0)
        elif activation == "log_softmax":              # over the feature dim
            m = jnp.max(out, axis=-1, keepdims=True)
            z = out - m
            out = z - jnp.log(jnp.sum(jnp.exp(z), axis=-1, keepdims=True))
        out_ref[...] = out.astype(out_ref.dtype)


def _gat_attn_call(adj, h_heads, s_src, s_dst, bias, *, heads, out_ch, concat,
                   activation, tile_m, tile_k, out_dtype):
    n = adj.shape[0]
    assert n % tile_m == 0 and n % tile_k == 0, (n, tile_m, tile_k)
    grid_m, grid_k = n // tile_m, n // tile_k
    out_dim = heads * out_ch if concat else out_ch

    kern = functools.partial(gat_attn_kernel, heads=heads, out_ch=out_ch,
                             concat=concat, activation=activation)

    cost = pl.CostEstimate(
        flops=int(2 * heads * n * n * out_ch + 8 * heads * n * n),
        transcendentals=int(heads * n * n),
        bytes_accessed=int(adj.size * adj.dtype.itemsize
                           + grid_m * h_heads.size * h_heads.dtype.itemsize
                           + grid_m * s_src.size * 4 + grid_k * s_dst.size * 4
                           + n * out_dim * jnp.dtype(out_dtype).itemsize))

    return pl.pallas_call(
        kern,
        out_shape=jax.ShapeDtypeStruct((n, out_dim), out_dtype),
        grid=(grid_m, grid_k),
        in_specs=[
            pl.BlockSpec((tile_m, tile_k), lambda i, k: (i, k)),            # adj (streamed)
            pl.BlockSpec((heads, tile_k, out_ch), lambda i, k: (0, k, 0)),  # h, per source tile
            pl.BlockSpec((heads, tile_k), lambda i, k: (0, k)),             # s_src, per src tile
            pl.BlockSpec((tile_m, heads), lambda i, k: (i, 0)),             # s_dst, per row tile
            pl.BlockSpec(bias.shape, lambda i, k: (0, 0)),                  # bias (resident)
        ],
        out_specs=pl.BlockSpec((tile_m, out_dim), lambda i, k: (i, 0)),
        scratch_shapes=[
            pltpu.VMEM((heads, tile_m, 1), jnp.float32),        # running max
            pltpu.VMEM((heads, tile_m, 1), jnp.float32),        # running denominator
            pltpu.VMEM((heads, tile_m, out_ch), jnp.float32),   # running numerator
        ],
        compiler_params=pltpu.CompilerParams(
            # Row tiles shard across v7x's two TensorCores; the source axis carries the
            # online-softmax accumulator state and must remain "arbitrary".
            dimension_semantics=("parallel", "arbitrary"),
            # <= ~48 MiB keeps headroom on v7x's 64 MiB VMEM; v5e/v6e (128 MiB) can raise this
            # together with a larger tile_m if desired.
            vmem_limit_bytes=48 * 1024 * 1024),
        cost_estimate=cost,
    )(adj, h_heads, s_src, s_dst, bias)


def _project(x, w, a_src, a_dst, *, heads, out_ch):
    """Hoisted per-layer projection (plain XLA, computed exactly once per layer)."""
    n = x.shape[0]
    h = jnp.dot(x, w, preferred_element_type=jnp.float32).reshape(n, heads, out_ch)
    s_src = jnp.einsum('nhc,hc->hn', h, a_src)                     # [heads, N]
    s_dst = jnp.einsum('nhc,hc->nh', h, a_dst)                     # [N, heads]
    h_heads = jnp.transpose(h, (1, 0, 2)).astype(jnp.bfloat16)     # [heads, N, out_ch]
    return h_heads, s_src, s_dst


def _dense_adj(edge_index, n):
    # adj[dst, src] = 1 for every edge src -> dst; self-loops added (GATConv default).
    # int8 minimizes the only O(N^2) HBM stream (largest relative win on v5e / dual-TC v7x).
    # TODO(synk): for very large N build the mask in-kernel from scalar-prefetched edge lists
    # instead of materializing an N^2 array in HBM.
    adj = jnp.zeros((n, n), jnp.int8)
    adj = adj.at[edge_index[1], edge_index[0]].set(1)
    adj = adj.at[jnp.arange(n), jnp.arange(n)].set(1)
    return adj


def _pick_tiles(n):
    def pick(cands):
        for t in cands:
            if n % t == 0:
                return t
        return n            # small / odd N: single block == full array dims
    # tile_m = 256 is safe for v7x's 64 MiB VMEM; v5e/v6e (128 MiB) can push 512/1024.
    return pick((256, 128, 64, 32, 16, 8)), pick((512, 256, 128))


def gat_forward(x, edge_index, params, *, heads, hidden, out_ch,
                tile_m=None, tile_k=None):
    n = x.shape[0]
    tm, tk = _pick_tiles(n)
    tile_m = tm if tile_m is None else tile_m
    tile_k = tk if tile_k is None else tile_k
    adj = _dense_adj(edge_index, n)

    w1, asrc1, adst1, b1, w2, asrc2, adst2, b2 = params

    # conv1: GATConv(in -> hidden, heads, concat=True) ; ELU (fused into the kernel finalize)
    h1h, s1s, s1d = _project(x, w1, asrc1, adst1, heads=heads, out_ch=hidden)
    h1 = _gat_attn_call(adj, h1h, s1s, s1d, b1, heads=heads, out_ch=hidden, concat=True,
                        activation="elu", tile_m=tile_m, tile_k=tile_k,
                        out_dtype=jnp.bfloat16)

    # conv2: GATConv(heads*hidden -> out, heads=1, concat=False) ; log_softmax
    h2h, s2s, s2d = _project(h1.astype(jnp.float32), w2, asrc2, adst2,
                             heads=1, out_ch=out_ch)
    return _gat_attn_call(adj, h2h, s2s, s2d, b2, heads=1, out_ch=out_ch, concat=False,
                          activation="log_softmax", tile_m=tile_m, tile_k=tile_k,
                          out_dtype=jnp.float32)


def _glorot(key, shape):
    fan_in, fan_out = shape[-2], shape[-1]
    lim = (6.0 / (fan_in + fan_out)) ** 0.5
    return jax.random.uniform(key, shape, jnp.float32, -lim, lim)


def _reference(x, edge_index, params, *, heads, hidden, out_ch):
    """Plain-JAX reference (same math, full f32, exact softmax, outside Pallas)."""
    n = x.shape[0]
    adj = _dense_adj(edge_index, n).astype(jnp.float32)
    neg_mask = (adj - 1.0) * MASK_SCALE
    w1, asrc1, adst1, b1, w2, asrc2, adst2, b2 = params

    def conv(xx, w, a_src, a_dst, b, hds, oc, concat):
        h = (xx @ w).reshape(n, hds, oc)
        s_src = jnp.einsum('nhc,hc->nh', h, a_src)
        s_dst = jnp.einsum('nhc,hc->nh', h, a_dst)
        outs = []
        for hd in range(hds):
            sc = s_dst[:, hd:hd + 1] + s_src[:, hd][None, :]
            sc = jnp.maximum(sc, NEG_SLOPE * sc) + neg_mask
            alpha = jax.nn.softmax(sc, axis=1)
            outs.append(alpha @ h[:, hd, :])
        out = jnp.concatenate(outs, axis=1) if concat else sum(outs) / hds
        return out + b

    h1 = conv(x, w1, asrc1, adst1, b1, heads, hidden, True)
    h1 = jnp.where(h1 > 0, h1, jnp.exp(h1) - 1.0)                  # ELU
    h2 = conv(h1, w2, asrc2, adst2, b2, 1, out_ch, False)
    return jax.nn.log_softmax(h2, axis=1)


if __name__ == "__main__":
    N, IN_CH, HIDDEN, OUT_CH, HEADS = 16, 8, 8, 4, 2

    key = jax.random.PRNGKey(0)
    k_x, k_w1, k_a1s, k_a1d, k_w2, k_a2s, k_a2d = jax.random.split(key, 7)

    # Node features
    x = jax.random.normal(k_x, (N, IN_CH), jnp.float32)

    # Deterministic edge_index: bidirectional ring graph (row 0 = sources, row 1 = targets).
    src = jnp.concatenate([jnp.arange(N), (jnp.arange(N) + 1) % N])
    dst = jnp.concatenate([(jnp.arange(N) + 1) % N, jnp.arange(N)])
    edge_index = jnp.stack([src, dst]).astype(jnp.int32)          # [2, 32]

    # Parameters (deterministic glorot init, zero biases) -- GATConv shapes.
    w1 = _glorot(k_w1, (IN_CH, HEADS * HIDDEN))
    asrc1 = _glorot(k_a1s, (HEADS, HIDDEN))
    adst1 = _glorot(k_a1d, (HEADS, HIDDEN))
    b1 = jnp.zeros((1, HEADS * HIDDEN), jnp.float32)
    w2 = _glorot(k_w2, (HEADS * HIDDEN, OUT_CH))
    asrc2 = _glorot(k_a2s, (1, OUT_CH))
    adst2 = _glorot(k_a2d, (1, OUT_CH))
    b2 = jnp.zeros((1, OUT_CH), jnp.float32)
    params = (w1, asrc1, adst1, b1, w2, asrc2, adst2, b2)

    fwd = jax.jit(functools.partial(gat_forward, heads=HEADS, hidden=HIDDEN, out_ch=OUT_CH))
    out = jax.block_until_ready(fwd(x, edge_index, params))

    ref = _reference(x, edge_index, params, heads=HEADS, hidden=HIDDEN, out_ch=OUT_CH)
    assert out.shape == (N, OUT_CH), out.shape
    assert bool(jnp.all(jnp.isfinite(out)))
    # Tolerance covers bf16 features / layer-1 output, bf16 MXU aggregation and the
    # approximate EUP reciprocal.
    err = float(jnp.max(jnp.abs(out - ref)))
    assert bool(jnp.allclose(out, ref, atol=5e-2, rtol=5e-2)), err

    print("KERNEL_OK")
</pallas_src>

<mosaic_0001>
module attributes {stable_mosaic.version = 11 : i64} {
  func.func @gat_attn_kernel(%arg0: i32, %arg1: i32, %arg2: memref<16x16xi8, #tpu.memory_space<vmem>>, %arg3: memref<2x16x8xbf16, #tpu.memory_space<vmem>>, %arg4: memref<2x16xf32, #tpu.memory_space<vmem>>, %arg5: memref<16x2xf32, #tpu.memory_space<vmem>>, %arg6: memref<1x16xf32, #tpu.memory_space<vmem>>, %arg7: memref<16x16xbf16, #tpu.memory_space<vmem>>, %arg8: memref<2x16x1xf32, #tpu.memory_space<vmem>>, %arg9: memref<2x16x1xf32, #tpu.memory_space<vmem>>, %arg10: memref<2x16x8xf32, #tpu.memory_space<vmem>>) attributes {dimension_semantics = [#tpu.dimension_semantics<parallel>, #tpu.dimension_semantics<arbitrary>], iteration_bounds = array<i64: 1, 1>, scalar_prefetch = 0 : i64, scratch_operands = 3 : i64, tpu.core_type = #tpu.core_type<tc>, window_params = [{transform_indices = @transform_0, window_bounds = array<i64: 16, 16>}, {transform_indices = @transform_1, window_bounds = array<i64: 2, 16, 8>}, {transform_indices = @transform_2, window_bounds = array<i64: 2, 16>}, {transform_indices = @transform_3, window_bounds = array<i64: 16, 2>}, {pipeline_mode = #tpu.pipeline_mode<synchronous>, transform_indices = @transform_4, window_bounds = array<i64: 1, 16>}, {transform_indices = @transform_5, window_bounds = array<i64: 16, 16>}]} {
    %c0_i32 = arith.constant 0 : i32
    %0 = arith.cmpi eq, %arg1, %c0_i32 : i32
    %1 = arith.extui %0 : i1 to i32
    %c0_i32_0 = arith.constant 0 : i32
    %2 = arith.cmpi ne, %1, %c0_i32_0 : i32
    scf.if %2 {
      %cst_58 = arith.constant 0xFF800000 : f32
      %100 = vector.broadcast %cst_58 : f32 to vector<2x16x1xf32>
      %c0_59 = arith.constant 0 : index
      %c0_60 = arith.constant 0 : index
      %c0_61 = arith.constant 0 : index
      %101 = vector.load %arg8[%c0_59, %c0_60, %c0_61] : memref<2x16x1xf32, #tpu.memory_space<vmem>>, vector<2x16x1xf32>
      tpu.vector_store %arg8[%c0_59, %c0_60, %c0_61], %100 {strides = array<i32>} : memref<2x16x1xf32, #tpu.memory_space<vmem>>, vector<2x16x1xf32>,
      %cst_62 = arith.constant 0.000000e+00 : f32
      %102 = vector.broadcast %cst_62 : f32 to vector<2x16x1xf32>
      %c0_63 = arith.constant 0 : index
      %c0_64 = arith.constant 0 : index
      %c0_65 = arith.constant 0 : index
      %103 = vector.load %arg9[%c0_63, %c0_64, %c0_65] : memref<2x16x1xf32, #tpu.memory_space<vmem>>, vector<2x16x1xf32>
      tpu.vector_store %arg9[%c0_63, %c0_64, %c0_65], %102 {strides = array<i32>} : memref<2x16x1xf32, #tpu.memory_space<vmem>>, vector<2x16x1xf32>,
      %cst_66 = arith.constant 0.000000e+00 : f32
      %104 = vector.broadcast %cst_66 : f32 to vector<2x16x8xf32>
      %c0_67 = arith.constant 0 : index
      %c0_68 = arith.constant 0 : index
      %c0_69 = arith.constant 0 : index
      %105 = vector.load %arg10[%c0_67, %c0_68, %c0_69] : memref<2x16x8xf32, #tpu.memory_space<vmem>>, vector<2x16x8xf32>
      tpu.vector_store %arg10[%c0_67, %c0_68, %c0_69], %104 {strides = array<i32>} : memref<2x16x8xf32, #tpu.memory_space<vmem>>, vector<2x16x8xf32>,
    } else {
    }
    %c0 = arith.constant 0 : index
    %c0_1 = arith.constant 0 : index
    %3 = vector.load %arg2[%c0, %c0_1] : memref<16x16xi8, #tpu.memory_space<vmem>>, vector<16x16xi8>
    %4 = arith.sitofp %3 : vector<16x16xi8> to vector<16x16xf32>
    %cst = arith.constant 1.000000e+00 : f32
    %5 = vector.broadcast %cst : f32 to vector<16x16xf32>
    %6 = arith.subf %4, %5 : vector<16x16xf32>
    %cst_2 = arith.constant 1.000000e+09 : f32
    %7 = vector.broadcast %cst_2 : f32 to vector<16x16xf32>
    %8 = arith.mulf %6, %7 : vector<16x16xf32>
    %c0_3 = arith.constant 0 : index
    %c0_4 = arith.constant 0 : index
    %9 = vector.load %arg5[%c0_3, %c0_4] : memref<16x2xf32, #tpu.memory_space<vmem>>, vector<16x2xf32>
    %c0_5 = arith.constant 0 : index
    %c0_6 = arith.constant 0 : index
    %10 = vector.load %arg4[%c0_5, %c0_6] : memref<2x16xf32, #tpu.memory_space<vmem>>, vector<2x16xf32>
    %11 = vector.extract_strided_slice %9 {offsets = [0, 0], sizes = [16, 1], strides = [1, 1]} : vector<16x2xf32> to vector<16x1xf32>
    %12 = vector.extract_strided_slice %10 {offsets = [0, 0], sizes = [1, 16], strides = [1, 1]} : vector<2x16xf32> to vector<1x16xf32>
    %13 = vector.broadcast %11 : vector<16x1xf32> to vector<16x16xf32>
    %14 = vector.broadcast %12 : vector<1x16xf32> to vector<16x16xf32>
    %15 = arith.addf %13, %14 : vector<16x16xf32>
    %cst_7 = arith.constant 2.000000e-01 : f32
    %16 = vector.broadcast %cst_7 : f32 to vector<16x16xf32>
    %17 = arith.mulf %16, %15 : vector<16x16xf32>
    %18 = arith.maximumf %15, %17 : vector<16x16xf32>
    %19 = arith.addf %18, %8 : vector<16x16xf32>
    %c0_8 = arith.constant 0 : index
    %c0_9 = arith.constant 0 : index
    %c0_10 = arith.constant 0 : index
    %20 = vector.load %arg8[%c0_8, %c0_9, %c0_10] : memref<2x16x1xf32, #tpu.memory_space<vmem>>, vector<1x16x1xf32>
    %21 = vector.shape_cast %20 : vector<1x16x1xf32> to vector<16x1xf32>
    %cst_11 = arith.constant dense<0xFF800000> : vector<16xf32>
    %22 = vector.multi_reduction <maximumf>, %19, %cst_11 [1] : vector<16x16xf32> to vector<16xf32>
    %23 = vector.shape_cast %22 : vector<16xf32> to vector<16x1xf32>
    %24 = arith.maximumf %21, %23 : vector<16x1xf32>
    %25 = arith.subf %21, %24 : vector<16x1xf32>
    %26 = math.exp %25 : vector<16x1xf32>
    %27 = vector.broadcast %24 : vector<16x1xf32> to vector<16x16xf32>
    %28 = arith.subf %19, %27 : vector<16x16xf32>
    %29 = math.exp %28 : vector<16x16xf32>
    %c0_12 = arith.constant 0 : index
    %c0_13 = arith.constant 0 : index
    %c0_14 = arith.constant 0 : index
    %30 = vector.load %arg9[%c0_12, %c0_13, %c0_14] : memref<2x16x1xf32, #tpu.memory_space<vmem>>, vector<1x16x1xf32>
    %31 = vector.shape_cast %30 : vector<1x16x1xf32> to vector<16x1xf32>
    %32 = arith.mulf %26, %31 : vector<16x1xf32>
    %cst_15 = arith.constant dense<0.000000e+00> : vector<16xf32>
    %33 = vector.multi_reduction <add>, %29, %cst_15 [1] : vector<16x16xf32> to vector<16xf32>
    %34 = vector.shape_cast %33 : vector<16xf32> to vector<16x1xf32>
    %35 = arith.addf %32, %34 : vector<16x1xf32>
    %c0_16 = arith.constant 0 : index
    %c0_17 = arith.constant 0 : index
    %c0_18 = arith.constant 0 : index
    %36 = vector.load %arg9[%c0_16, %c0_17, %c0_18] : memref<2x16x1xf32, #tpu.memory_space<vmem>>, vector<1x16x1xf32>
    %37 = vector.shape_cast %36 : vector<1x16x1xf32> to vector<16x1xf32>
    %38 = vector.shape_cast %35 : vector<16x1xf32> to vector<1x16x1xf32>
    tpu.vector_store %arg9[%c0_16, %c0_17, %c0_18], %38 {strides = array<i32>} : memref<2x16x1xf32, #tpu.memory_space<vmem>>, vector<1x16x1xf32>,
    %c0_19 = arith.constant 0 : index
    %c0_20 = arith.constant 0 : index
    %c0_21 = arith.constant 0 : index
    %39 = vector.load %arg10[%c0_19, %c0_20, %c0_21] : memref<2x16x8xf32, #tpu.memory_space<vmem>>, vector<1x16x8xf32>
    %40 = vector.shape_cast %39 : vector<1x16x8xf32> to vector<16x8xf32>
    %41 = vector.broadcast %26 : vector<16x1xf32> to vector<16x8xf32>
    %42 = arith.mulf %41, %40 : vector<16x8xf32>
    %43 = arith.truncf %29 : vector<16x16xf32> to vector<16x16xbf16>
    %c0_22 = arith.constant 0 : index
    %c0_23 = arith.constant 0 : index
    %c0_24 = arith.constant 0 : index
    %44 = vector.load %arg3[%c0_22, %c0_23, %c0_24] : memref<2x16x8xbf16, #tpu.memory_space<vmem>>, vector<1x16x8xbf16>
    %45 = vector.shape_cast %44 : vector<1x16x8xbf16> to vector<16x8xbf16>
    %cst_25 = arith.constant dense<0.000000e+00> : vector<16x8xf32>
    %46 = tpu.matmul %43, %45, %cst_25 {dimension_numbers = #tpu.dot_dimension_numbers<[1], [0], [0], [1], [0, 0, 1, 1], [], []>} : vector<16x16xbf16>, vector<16x8xbf16>, vector<16x8xf32> -> vector<16x8xf32>
    %47 = arith.addf %42, %46 : vector<16x8xf32>
    %c0_26 = arith.constant 0 : index
    %c0_27 = arith.constant 0 : index
    %c0_28 = arith.constant 0 : index
    %48 = vector.load %arg10[%c0_26, %c0_27, %c0_28] : memref<2x16x8xf32, #tpu.memory_space<vmem>>, vector<1x16x8xf32>
    %49 = vector.shape_cast %48 : vector<1x16x8xf32> to vector<16x8xf32>
    %50 = vector.shape_cast %47 : vector<16x8xf32> to vector<1x16x8xf32>
    tpu.vector_store %arg10[%c0_26, %c0_27, %c0_28], %50 {strides = array<i32>} : memref<2x16x8xf32, #tpu.memory_space<vmem>>, vector<1x16x8xf32>,
    %c0_29 = arith.constant 0 : index
    %c0_30 = arith.constant 0 : index
    %c0_31 = arith.constant 0 : index
    %51 = vector.load %arg8[%c0_29, %c0_30, %c0_31] : memref<2x16x1xf32, #tpu.memory_space<vmem>>, vector<1x16x1xf32>
    %52 = vector.shape_cast %51 : vector<1x16x1xf32> to vector<16x1xf32>
    %53 = vector.shape_cast %24 : vector<16x1xf32> to vector<1x16x1xf32>
    tpu.vector_store %arg8[%c0_29, %c0_30, %c0_31], %53 {strides = array<i32>} : memref<2x16x1xf32, #tpu.memory_space<vmem>>, vector<1x16x1xf32>,
    %54 = vector.extract_strided_slice %9 {offsets = [0, 1], sizes = [16, 1], strides = [1, 1]} : vector<16x2xf32> to vector<16x1xf32>
    %55 = vector.extract_strided_slice %10 {offsets = [1, 0], sizes = [1, 16], strides = [1, 1]} : vector<2x16xf32> to vector<1x16xf32>
    %56 = vector.broadcast %54 : vector<16x1xf32> to vector<16x16xf32>
    %57 = vector.broadcast %55 : vector<1x16xf32> to vector<16x16xf32>
    %58 = arith.addf %56, %57 : vector<16x16xf32>
    %cst_32 = arith.constant 2.000000e-01 : f32
    %59 = vector.broadcast %cst_32 : f32 to vector<16x16xf32>
    %60 = arith.mulf %59, %58 : vector<16x16xf32>
    %61 = arith.maximumf %58, %60 : vector<16x16xf32>
    %62 = arith.addf %61, %8 : vector<16x16xf32>
    %c1 = arith.constant 1 : index
    %c0_33 = arith.constant 0 : index
    %c0_34 = arith.constant 0 : index
    %63 = vector.load %arg8[%c1, %c0_33, %c0_34] : memref<2x16x1xf32, #tpu.memory_space<vmem>>, vector<1x16x1xf32>
    %64 = vector.shape_cast %63 : vector<1x16x1xf32> to vector<16x1xf32>
    %cst_35 = arith.constant dense<0xFF800000> : vector<16xf32>
    %65 = vector.multi_reduction <maximumf>, %62, %cst_35 [1] : vector<16x16xf32> to vector<16xf32>
    %66 = vector.shape_cast %65 : vector<16xf32> to vector<16x1xf32>
    %67 = arith.maximumf %64, %66 : vector<16x1xf32>
    %68 = arith.subf %64, %67 : vector<16x1xf32>
    %69 = math.exp %68 : vector<16x1xf32>
    %70 = vector.broadcast %67 : vector<16x1xf32> to vector<16x16xf32>
    %71 = arith.subf %62, %70 : vector<16x16xf32>
    %72 = math.exp %71 : vector<16x16xf32>
    %c1_36 = arith.constant 1 : index
    %c0_37 = arith.constant 0 : index
    %c0_38 = arith.constant 0 : index
    %73 = vector.load %arg9[%c1_36, %c0_37, %c0_38] : memref<2x16x1xf32, #tpu.memory_space<vmem>>, vector<1x16x1xf32>
    %74 = vector.shape_cast %73 : vector<1x16x1xf32> to vector<16x1xf32>
    %75 = arith.mulf %69, %74 : vector<16x1xf32>
    %cst_39 = arith.constant dense<0.000000e+00> : vector<16xf32>
    %76 = vector.multi_reduction <add>, %72, %cst_39 [1] : vector<16x16xf32> to vector<16xf32>
    %77 = vector.shape_cast %76 : vector<16xf32> to vector<16x1xf32>
    %78 = arith.addf %75, %77 : vector<16x1xf32>
    %c1_40 = arith.constant 1 : index
    %c0_41 = arith.constant 0 : index
    %c0_42 = arith.constant 0 : index
    %79 = vector.load %arg9[%c1_40, %c0_41, %c0_42] : memref<2x16x1xf32, #tpu.memory_space<vmem>>, vector<1x16x1xf32>
    %80 = vector.shape_cast %79 : vector<1x16x1xf32> to vector<16x1xf32>
    %81 = vector.shape_cast %78 : vector<16x1xf32> to vector<1x16x1xf32>
    tpu.vector_store %arg9[%c1_40, %c0_41, %c0_42], %81 {strides = array<i32>} : memref<2x16x1xf32, #tpu.memory_space<vmem>>, vector<1x16x1xf32>,
    %c1_43 = arith.constant 1 : index
    %c0_44 = arith.constant 0 : index
    %c0_45 = arith.constant 0 : index
    %82 = vector.load %arg10[%c1_43, %c0_44, %c0_45] : memref<2x16x8xf32, #tpu.memory_space<vmem>>, vector<1x16x8xf32>
    %83 = vector.shape_cast %82 : vector<1x16x8xf32> to vector<16x8xf32>
    %84 = vector.broadcast %69 : vector<16x1xf32> to vector<16x8xf32>
    %85 = arith.mulf %84, %83 : vector<16x8xf32>
    %86 = arith.truncf %72 : vector<16x16xf32> to vector<16x16xbf16>
    %c1_46 = arith.constant 1 : index
    %c0_47 = arith.constant 0 : index
    %c0_48 = arith.constant 0 : index
    %87 = vector.load %arg3[%c1_46, %c0_47, %c0_48] : memref<2x16x8xbf16, #tpu.memory_space<vmem>>, vector<1x16x8xbf16>
    %88 = vector.shape_cast %87 : vector<1x16x8xbf16> to vector<16x8xbf16>
    %cst_49 = arith.constant dense<0.000000e+00> : vector<16x8xf32>
    %89 = tpu.matmul %86, %88, %cst_49 {dimension_numbers = #tpu.dot_dimension_numbers<[1], [0], [0], [1], [0, 0, 1, 1], [], []>} : vector<16x16xbf16>, vector<16x8xbf16>, vector<16x8xf32> -> vector<16x8xf32>
    %90 = arith.addf %85, %89 : vector<16x8xf32>
    %c1_50 = arith.constant 1 : index
    %c0_51 = arith.constant 0 : index
    %c0_52 = arith.constant 0 : index
    %91 = vector.load %arg10[%c1_50, %c0_51, %c0_52] : memref<2x16x8xf32, #tpu.memory_space<vmem>>, vector<1x16x8xf32>
    %92 = vector.shape_cast %91 : vector<1x16x8xf32> to vector<16x8xf32>
    %93 = vector.shape_cast %90 : vector<16x8xf32> to vector<1x16x8xf32>
    tpu.vector_store %arg10[%c1_50, %c0_51, %c0_52], %93 {strides = array<i32>} : memref<2x16x8xf32, #tpu.memory_space<vmem>>, vector<1x16x8xf32>,
    %c1_53 = arith.constant 1 : index
    %c0_54 = arith.constant 0 : index
    %c0_55 = arith.constant 0 : index
    %94 = vector.load %arg8[%c1_53, %c0_54, %c0_55] : memref<2x16x1xf32, #tpu.memory_space<vmem>>, vector<1x16x1xf32>
    %95 = vector.shape_cast %94 : vector<1x16x1xf32> to vector<16x1xf32>
    %96 = vector.shape_cast %67 : vector<16x1xf32> to vector<1x16x1xf32>
    tpu.vector_store %arg8[%c1_53, %c0_54, %c0_55], %96 {strides = array<i32>} : memref<2x16x1xf32, #tpu.memory_space<vmem>>, vector<1x16x1xf32>,
    %c0_i32_56 = arith.constant 0 : i32
    %97 = arith.cmpi eq, %arg1, %c0_i32_56 : i32
    %98 = arith.extui %97 : i1 to i32
    %c0_i32_57 = arith.constant 0 : i32
    %99 = arith.cmpi ne, %98, %c0_i32_57 : i32
    scf.if %99 {
      %c0_58 = arith.constant 0 : index
      %c0_59 = arith.constant 0 : index
      %c0_60 = arith.constant 0 : index
      %100 = vector.load %arg9[%c0_58, %c0_59, %c0_60] : memref<2x16x1xf32, #tpu.memory_space<vmem>>, vector<1x16x1xf32>
      %101 = vector.shape_cast %100 : vector<1x16x1xf32> to vector<16x1xf32>
      %cst_61 = arith.constant 9.99999996E-13 : f32
      %102 = vector.broadcast %cst_61 : f32 to vector<16x1xf32>
      %103 = arith.maximumf %101, %102 : vector<16x1xf32>
      %c0_62 = arith.constant 0 : index
      %c0_63 = arith.constant 0 : index
      %c0_64 = arith.constant 0 : index
      %104 = vector.load %arg10[%c0_62, %c0_63, %c0_64] : memref<2x16x8xf32, #tpu.memory_space<vmem>>, vector<1x16x8xf32>
      %105 = vector.shape_cast %104 : vector<1x16x8xf32> to vector<16x8xf32>
      %106 = tpu.reciprocal %103 {approx = true} : vector<16x1xf32> -> vector<16x1xf32>
      %107 = vector.broadcast %106 : vector<16x1xf32> to vector<16x8xf32>
      %108 = arith.mulf %105, %107 : vector<16x8xf32>
      %c1_65 = arith.constant 1 : index
      %c0_66 = arith.constant 0 : index
      %c0_67 = arith.constant 0 : index
      %109 = vector.load %arg9[%c1_65, %c0_66, %c0_67] : memref<2x16x1xf32, #tpu.memory_space<vmem>>, vector<1x16x1xf32>
      %110 = vector.shape_cast %109 : vector<1x16x1xf32> to vector<16x1xf32>
      %cst_68 = arith.constant 9.99999996E-13 : f32
      %111 = vector.broadcast %cst_68 : f32 to vector<16x1xf32>
      %112 = arith.maximumf %110, %111 : vector<16x1xf32>
      %c1_69 = arith.constant 1 : index
      %c0_70 = arith.constant 0 : index
      %c0_71 = arith.constant 0 : index
      %113 = vector.load %arg10[%c1_69, %c0_70, %c0_71] : memref<2x16x8xf32, #tpu.memory_space<vmem>>, vector<1x16x8xf32>
      %114 = vector.shape_cast %113 : vector<1x16x8xf32> to vector<16x8xf32>
      %115 = tpu.reciprocal %112 {approx = true} : vector<16x1xf32> -> vector<16x1xf32>
      %116 = vector.broadcast %115 : vector<16x1xf32> to vector<16x8xf32>
      %117 = arith.mulf %114, %116 : vector<16x8xf32>
      %118 = tpu.concatenate %108, %117 in 1 : vector<16x8xf32>, vector<16x8xf32> -> vector<16x16xf32>
      %c0_72 = arith.constant 0 : index
      %c0_73 = arith.constant 0 : index
      %119 = vector.load %arg6[%c0_72, %c0_73] : memref<1x16xf32, #tpu.memory_space<vmem>>, vector<1x16xf32>
      %120 = vector.broadcast %119 : vector<1x16xf32> to vector<16x16xf32>
      %121 = arith.addf %118, %120 : vector<16x16xf32>
      %cst_74 = arith.constant 0.000000e+00 : f32
      %122 = vector.broadcast %cst_74 : f32 to vector<16x16xf32>
      %123 = arith.cmpf ogt, %121, %122 : vector<16x16xf32>
      %124 = math.exp %121 : vector<16x16xf32>
      %cst_75 = arith.constant 1.000000e+00 : f32
      %125 = vector.broadcast %cst_75 : f32 to vector<16x16xf32>
      %126 = arith.subf %124, %125 : vector<16x16xf32>
      %127 = arith.select %123, %121, %126 : vector<16x16xi1>, vector<16x16xf32>
      %128 = arith.truncf %127 : vector<16x16xf32> to vector<16x16xbf16>
      %c0_76 = arith.constant 0 : index
      %c0_77 = arith.constant 0 : index
      %129 = vector.load %arg7[%c0_76, %c0_77] : memref<16x16xbf16, #tpu.memory_space<vmem>>, vector<16x16xbf16>
      tpu.vector_store %arg7[%c0_76, %c0_77], %128 {strides = array<i32>} : memref<16x16xbf16, #tpu.memory_space<vmem>>, vector<16x16xbf16>,
    } else {
    }
    return
  }
  func.func @transform_0(%arg0: i32, %arg1: i32) -> (i32, i32) {
    %c0_i32 = arith.constant 0 : i32
    return %arg0, %arg1 : i32, i32
  }
  func.func @transform_1(%arg0: i32, %arg1: i32) -> (i32, i32, i32) {
    %c0_i32 = arith.constant 0 : i32
    %c0_i32_0 = arith.constant 0 : i32
    %c0_i32_1 = arith.constant 0 : i32
    return %c0_i32, %arg1, %c0_i32_0 : i32, i32, i32
  }
  func.func @transform_2(%arg0: i32, %arg1: i32) -> (i32, i32) {
    %c0_i32 = arith.constant 0 : i32
    %c0_i32_0 = arith.constant 0 : i32
    return %c0_i32, %arg1 : i32, i32
  }
  func.func @transform_3(%arg0: i32, %arg1: i32) -> (i32, i32) {
    %c0_i32 = arith.constant 0 : i32
    %c0_i32_0 = arith.constant 0 : i32
    return %arg0, %c0_i32 : i32, i32
  }
  func.func @transform_4(%arg0: i32, %arg1: i32) -> (i32, i32) {
    %c0_i32 = arith.constant 0 : i32
    %c0_i32_0 = arith.constant 0 : i32
    %c0_i32_1 = arith.constant 0 : i32
    return %c0_i32, %c0_i32_0 : i32, i32
  }
  func.func @transform_5(%arg0: i32, %arg1: i32) -> (i32, i32) {
    %c0_i32 = arith.constant 0 : i32
    %c0_i32_0 = arith.constant 0 : i32
    return %arg0, %c0_i32 : i32, i32
  }
}

module attributes {stable_mosaic.version = 11 : i64} {
  func.func @gat_attn_kernel(%arg0: i32, %arg1: i32, %arg2: memref<16x16xi8, #tpu.memory_space<vmem>>, %arg3: memref<1x16x4xbf16, #tpu.memory_space<vmem>>, %arg4: memref<1x16xf32, #tpu.memory_space<vmem>>, %arg5: memref<16x1xf32, #tpu.memory_space<vmem>>, %arg6: memref<1x4xf32, #tpu.memory_space<vmem>>, %arg7: memref<16x4xf32, #tpu.memory_space<vmem>>, %arg8: memref<1x16x1xf32, #tpu.memory_space<vmem>>, %arg9: memref<1x16x1xf32, #tpu.memory_space<vmem>>, %arg10: memref<1x16x4xf32, #tpu.memory_space<vmem>>) attributes {dimension_semantics = [#tpu.dimension_semantics<parallel>, #tpu.dimension_semantics<arbitrary>], iteration_bounds = array<i64: 1, 1>, scalar_prefetch = 0 : i64, scratch_operands = 3 : i64, tpu.core_type = #tpu.core_type<tc>, window_params = [{transform_indices = @transform_0, window_bounds = array<i64: 16, 16>}, {transform_indices = @transform_1, window_bounds = array<i64: 1, 16, 4>}, {transform_indices = @transform_2, window_bounds = array<i64: 1, 16>}, {transform_indices = @transform_3, window_bounds = array<i64: 16, 1>}, {pipeline_mode = #tpu.pipeline_mode<synchronous>, transform_indices = @transform_4, window_bounds = array<i64: 1, 4>}, {transform_indices = @transform_5, window_bounds = array<i64: 16, 4>}]} {
    %c0_i32 = arith.constant 0 : i32
    %0 = arith.cmpi eq, %arg1, %c0_i32 : i32
    %1 = arith.extui %0 : i1 to i32
    %c0_i32_0 = arith.constant 0 : i32
    %2 = arith.cmpi ne, %1, %c0_i32_0 : i32
    scf.if %2 {
      %cst_34 = arith.constant 0xFF800000 : f32
      %55 = vector.broadcast %cst_34 : f32 to vector<1x16x1xf32>
      %c0_35 = arith.constant 0 : index
      %c0_36 = arith.constant 0 : index
      %c0_37 = arith.constant 0 : index
      %56 = vector.load %arg8[%c0_35, %c0_36, %c0_37] : memref<1x16x1xf32, #tpu.memory_space<vmem>>, vector<1x16x1xf32>
      tpu.vector_store %arg8[%c0_35, %c0_36, %c0_37], %55 {strides = array<i32>} : memref<1x16x1xf32, #tpu.memory_space<vmem>>, vector<1x16x1xf32>,
      %cst_38 = arith.constant 0.000000e+00 : f32
      %57 = vector.broadcast %cst_38 : f32 to vector<1x16x1xf32>
      %c0_39 = arith.constant 0 : index
      %c0_40 = arith.constant 0 : index
      %c0_41 = arith.constant 0 : index
      %58 = vector.load %arg9[%c0_39, %c0_40, %c0_41] : memref<1x16x1xf32, #tpu.memory_space<vmem>>, vector<1x16x1xf32>
      tpu.vector_store %arg9[%c0_39, %c0_40, %c0_41], %57 {strides = array<i32>} : memref<1x16x1xf32, #tpu.memory_space<vmem>>, vector<1x16x1xf32>,
      %cst_42 = arith.constant 0.000000e+00 : f32
      %59 = vector.broadcast %cst_42 : f32 to vector<1x16x4xf32>
      %c0_43 = arith.constant 0 : index
      %c0_44 = arith.constant 0 : index
      %c0_45 = arith.constant 0 : index
      %60 = vector.load %arg10[%c0_43, %c0_44, %c0_45] : memref<1x16x4xf32, #tpu.memory_space<vmem>>, vector<1x16x4xf32>
      tpu.vector_store %arg10[%c0_43, %c0_44, %c0_45], %59 {strides = array<i32>} : memref<1x16x4xf32, #tpu.memory_space<vmem>>, vector<1x16x4xf32>,
    } else {
    }
    %c0 = arith.constant 0 : index
    %c0_1 = arith.constant 0 : index
    %3 = vector.load %arg2[%c0, %c0_1] : memref<16x16xi8, #tpu.memory_space<vmem>>, vector<16x16xi8>
    %4 = arith.sitofp %3 : vector<16x16xi8> to vector<16x16xf32>
    %cst = arith.constant 1.000000e+00 : f32
    %5 = vector.broadcast %cst : f32 to vector<16x16xf32>
    %6 = arith.subf %4, %5 : vector<16x16xf32>
    %cst_2 = arith.constant 1.000000e+09 : f32
    %7 = vector.broadcast %cst_2 : f32 to vector<16x16xf32>
    %8 = arith.mulf %6, %7 : vector<16x16xf32>
    %c0_3 = arith.constant 0 : index
    %c0_4 = arith.constant 0 : index
    %9 = vector.load %arg5[%c0_3, %c0_4] : memref<16x1xf32, #tpu.memory_space<vmem>>, vector<16x1xf32>
    %c0_5 = arith.constant 0 : index
    %c0_6 = arith.constant 0 : index
    %10 = vector.load %arg4[%c0_5, %c0_6] : memref<1x16xf32, #tpu.memory_space<vmem>>, vector<1x16xf32>
    %11 = vector.broadcast %9 : vector<16x1xf32> to vector<16x16xf32>
    %12 = vector.broadcast %10 : vector<1x16xf32> to vector<16x16xf32>
    %13 = arith.addf %11, %12 : vector<16x16xf32>
    %cst_7 = arith.constant 2.000000e-01 : f32
    %14 = vector.broadcast %cst_7 : f32 to vector<16x16xf32>
    %15 = arith.mulf %14, %13 : vector<16x16xf32>
    %16 = arith.maximumf %13, %15 : vector<16x16xf32>
    %17 = arith.addf %16, %8 : vector<16x16xf32>
    %c0_8 = arith.constant 0 : index
    %c0_9 = arith.constant 0 : index
    %c0_10 = arith.constant 0 : index
    %18 = vector.load %arg8[%c0_8, %c0_9, %c0_10] : memref<1x16x1xf32, #tpu.memory_space<vmem>>, vector<1x16x1xf32>
    %19 = vector.shape_cast %18 : vector<1x16x1xf32> to vector<16x1xf32>
    %cst_11 = arith.constant dense<0xFF800000> : vector<16xf32>
    %20 = vector.multi_reduction <maximumf>, %17, %cst_11 [1] : vector<16x16xf32> to vector<16xf32>
    %21 = vector.shape_cast %20 : vector<16xf32> to vector<16x1xf32>
    %22 = arith.maximumf %19, %21 : vector<16x1xf32>
    %23 = arith.subf %19, %22 : vector<16x1xf32>
    %24 = math.exp %23 : vector<16x1xf32>
    %25 = vector.broadcast %22 : vector<16x1xf32> to vector<16x16xf32>
    %26 = arith.subf %17, %25 : vector<16x16xf32>
    %27 = math.exp %26 : vector<16x16xf32>
    %c0_12 = arith.constant 0 : index
    %c0_13 = arith.constant 0 : index
    %c0_14 = arith.constant 0 : index
    %28 = vector.load %arg9[%c0_12, %c0_13, %c0_14] : memref<1x16x1xf32, #tpu.memory_space<vmem>>, vector<1x16x1xf32>
    %29 = vector.shape_cast %28 : vector<1x16x1xf32> to vector<16x1xf32>
    %30 = arith.mulf %24, %29 : vector<16x1xf32>
    %cst_15 = arith.constant dense<0.000000e+00> : vector<16xf32>
    %31 = vector.multi_reduction <add>, %27, %cst_15 [1] : vector<16x16xf32> to vector<16xf32>
    %32 = vector.shape_cast %31 : vector<16xf32> to vector<16x1xf32>
    %33 = arith.addf %30, %32 : vector<16x1xf32>
    %c0_16 = arith.constant 0 : index
    %c0_17 = arith.constant 0 : index
    %c0_18 = arith.constant 0 : index
    %34 = vector.load %arg9[%c0_16, %c0_17, %c0_18] : memref<1x16x1xf32, #tpu.memory_space<vmem>>, vector<1x16x1xf32>
    %35 = vector.shape_cast %34 : vector<1x16x1xf32> to vector<16x1xf32>
    %36 = vector.shape_cast %33 : vector<16x1xf32> to vector<1x16x1xf32>
    tpu.vector_store %arg9[%c0_16, %c0_17, %c0_18], %36 {strides = array<i32>} : memref<1x16x1xf32, #tpu.memory_space<vmem>>, vector<1x16x1xf32>,
    %c0_19 = arith.constant 0 : index
    %c0_20 = arith.constant 0 : index
    %c0_21 = arith.constant 0 : index
    %37 = vector.load %arg10[%c0_19, %c0_20, %c0_21] : memref<1x16x4xf32, #tpu.memory_space<vmem>>, vector<1x16x4xf32>
    %38 = vector.shape_cast %37 : vector<1x16x4xf32> to vector<16x4xf32>
    %39 = vector.broadcast %24 : vector<16x1xf32> to vector<16x4xf32>
    %40 = arith.mulf %39, %38 : vector<16x4xf32>
    %41 = arith.truncf %27 : vector<16x16xf32> to vector<16x16xbf16>
    %c0_22 = arith.constant 0 : index
    %c0_23 = arith.constant 0 : index
    %c0_24 = arith.constant 0 : index
    %42 = vector.load %arg3[%c0_22, %c0_23, %c0_24] : memref<1x16x4xbf16, #tpu.memory_space<vmem>>, vector<1x16x4xbf16>
    %43 = vector.shape_cast %42 : vector<1x16x4xbf16> to vector<16x4xbf16>
    %cst_25 = arith.constant dense<0.000000e+00> : vector<16x4xf32>
    %44 = tpu.matmul %41, %43, %cst_25 {dimension_numbers = #tpu.dot_dimension_numbers<[1], [0], [0], [1], [0, 0, 1, 1], [], []>} : vector<16x16xbf16>, vector<16x4xbf16>, vector<16x4xf32> -> vector<16x4xf32>
    %45 = arith.addf %40, %44 : vector<16x4xf32>
    %c0_26 = arith.constant 0 : index
    %c0_27 = arith.constant 0 : index
    %c0_28 = arith.constant 0 : index
    %46 = vector.load %arg10[%c0_26, %c0_27, %c0_28] : memref<1x16x4xf32, #tpu.memory_space<vmem>>, vector<1x16x4xf32>
    %47 = vector.shape_cast %46 : vector<1x16x4xf32> to vector<16x4xf32>
    %48 = vector.shape_cast %45 : vector<16x4xf32> to vector<1x16x4xf32>
    tpu.vector_store %arg10[%c0_26, %c0_27, %c0_28], %48 {strides = array<i32>} : memref<1x16x4xf32, #tpu.memory_space<vmem>>, vector<1x16x4xf32>,
    %c0_29 = arith.constant 0 : index
    %c0_30 = arith.constant 0 : index
    %c0_31 = arith.constant 0 : index
    %49 = vector.load %arg8[%c0_29, %c0_30, %c0_31] : memref<1x16x1xf32, #tpu.memory_space<vmem>>, vector<1x16x1xf32>
    %50 = vector.shape_cast %49 : vector<1x16x1xf32> to vector<16x1xf32>
    %51 = vector.shape_cast %22 : vector<16x1xf32> to vector<1x16x1xf32>
    tpu.vector_store %arg8[%c0_29, %c0_30, %c0_31], %51 {strides = array<i32>} : memref<1x16x1xf32, #tpu.memory_space<vmem>>, vector<1x16x1xf32>,
    %c0_i32_32 = arith.constant 0 : i32
    %52 = arith.cmpi eq, %arg1, %c0_i32_32 : i32
    %53 = arith.extui %52 : i1 to i32
    %c0_i32_33 = arith.constant 0 : i32
    %54 = arith.cmpi ne, %53, %c0_i32_33 : i32
    scf.if %54 {
      %c0_34 = arith.constant 0 : index
      %c0_35 = arith.constant 0 : index
      %c0_36 = arith.constant 0 : index
      %55 = vector.load %arg9[%c0_34, %c0_35, %c0_36] : memref<1x16x1xf32, #tpu.memory_space<vmem>>, vector<1x16x1xf32>
      %56 = vector.shape_cast %55 : vector<1x16x1xf32> to vector<16x1xf32>
      %cst_37 = arith.constant 9.99999996E-13 : f32
      %57 = vector.broadcast %cst_37 : f32 to vector<16x1xf32>
      %58 = arith.maximumf %56, %57 : vector<16x1xf32>
      %c0_38 = arith.constant 0 : index
      %c0_39 = arith.constant 0 : index
      %c0_40 = arith.constant 0 : index
      %59 = vector.load %arg10[%c0_38, %c0_39, %c0_40] : memref<1x16x4xf32, #tpu.memory_space<vmem>>, vector<1x16x4xf32>
      %60 = vector.shape_cast %59 : vector<1x16x4xf32> to vector<16x4xf32>
      %61 = tpu.reciprocal %58 {approx = true} : vector<16x1xf32> -> vector<16x1xf32>
      %62 = vector.broadcast %61 : vector<16x1xf32> to vector<16x4xf32>
      %63 = arith.mulf %60, %62 : vector<16x4xf32>
      %cst_41 = arith.constant 1.000000e+00 : f32
      %64 = vector.broadcast %cst_41 : f32 to vector<16x4xf32>
      %65 = arith.mulf %63, %64 : vector<16x4xf32>
      %c0_42 = arith.constant 0 : index
      %c0_43 = arith.constant 0 : index
      %66 = vector.load %arg6[%c0_42, %c0_43] : memref<1x4xf32, #tpu.memory_space<vmem>>, vector<1x4xf32>
      %67 = vector.broadcast %66 : vector<1x4xf32> to vector<16x4xf32>
      %68 = arith.addf %65, %67 : vector<16x4xf32>
      %cst_44 = arith.constant dense<0xFF800000> : vector<16xf32>
      %69 = vector.multi_reduction <maximumf>, %68, %cst_44 [1] : vector<16x4xf32> to vector<16xf32>
      %70 = vector.shape_cast %69 : vector<16xf32> to vector<16x1xf32>
      %71 = vector.broadcast %70 : vector<16x1xf32> to vector<16x4xf32>
      %72 = arith.subf %68, %71 : vector<16x4xf32>
      %73 = math.exp %72 : vector<16x4xf32>
      %cst_45 = arith.constant dense<0.000000e+00> : vector<16xf32>
      %74 = vector.multi_reduction <add>, %73, %cst_45 [1] : vector<16x4xf32> to vector<16xf32>
      %75 = vector.shape_cast %74 : vector<16xf32> to vector<16x1xf32>
      %76 = math.log %75 : vector<16x1xf32>
      %77 = vector.broadcast %76 : vector<16x1xf32> to vector<16x4xf32>
      %78 = arith.subf %72, %77 : vector<16x4xf32>
      %c0_46 = arith.constant 0 : index
      %c0_47 = arith.constant 0 : index
      %79 = vector.load %arg7[%c0_46, %c0_47] : memref<16x4xf32, #tpu.memory_space<vmem>>, vector<16x4xf32>
      tpu.vector_store %arg7[%c0_46, %c0_47], %78 {strides = array<i32>} : memref<16x4xf32, #tpu.memory_space<vmem>>, vector<16x4xf32>,
    } else {
    }
    return
  }
  func.func @transform_0(%arg0: i32, %arg1: i32) -> (i32, i32) {
    %c0_i32 = arith.constant 0 : i32
    return %arg0, %arg1 : i32, i32
  }
  func.func @transform_1(%arg0: i32, %arg1: i32) -> (i32, i32, i32) {
    %c0_i32 = arith.constant 0 : i32
    %c0_i32_0 = arith.constant 0 : i32
    %c0_i32_1 = arith.constant 0 : i32
    return %c0_i32, %arg1, %c0_i32_0 : i32, i32, i32
  }
  func.func @transform_2(%arg0: i32, %arg1: i32) -> (i32, i32) {
    %c0_i32 = arith.constant 0 : i32
    %c0_i32_0 = arith.constant 0 : i32
    return %c0_i32, %arg1 : i32, i32
  }
  func.func @transform_3(%arg0: i32, %arg1: i32) -> (i32, i32) {
    %c0_i32 = arith.constant 0 : i32
    %c0_i32_0 = arith.constant 0 : i32
    return %arg0, %c0_i32 : i32, i32
  }
  func.func @transform_4(%arg0: i32, %arg1: i32) -> (i32, i32) {
    %c0_i32 = arith.constant 0 : i32
    %c0_i32_0 = arith.constant 0 : i32
    %c0_i32_1 = arith.constant 0 : i32
    return %c0_i32, %c0_i32_0 : i32, i32
  }
  func.func @transform_5(%arg0: i32, %arg1: i32) -> (i32, i32) {
    %c0_i32 = arith.constant 0 : i32
    %c0_i32_0 = arith.constant 0 : i32
    return %arg0, %c0_i32 : i32, i32
  }
}

</mosaic_0001>

<llo_original>
// kernel: gat_forward.2
$region0: #{gat_forward.2}
  #allocation0 [shape = 'u32[]', space=smem, size = 0x4, offset = 0x4, fixed_abs, tag = 'smem constant byte address 0x4 - core index']
  #allocation1 [shape = 'u32[144,128]{1,0:T(1,128)}', space=vmem, size = 0x12000, scoped, tag = 'internal scratch']
  #allocation2 [shape = 'f32[2,16,1]{2,1,0:T(8,128)}', space=vmem, size = 0x4000, scoped, tag = 'scratch operand']
  #allocation3 [shape = 'f32[2,16,1]{2,1,0:T(8,128)}', space=vmem, size = 0x4000, scoped, tag = 'scratch operand']
  #allocation4 [shape = 'f32[2,16,8]{2,1,0:T(8,128)}', space=vmem, size = 0x4000, scoped, tag = 'scratch operand']
  %s0 = inlined_call_operand.vmem [shape: s8[16,16], index: 0, kind: input, shape index: {}]
  %s1 = inlined_call_operand.vmem [shape: bf16[2,16,8], index: 1, kind: input, shape index: {}]
  %s2 = inlined_call_operand.vmem [shape: f32[2,16], index: 2, kind: input, shape index: {}]
  %s3 = inlined_call_operand.vmem [shape: f32[16,2], index: 3, kind: input, shape index: {}]
  %s4 = inlined_call_operand.vmem [shape: f32[1,16], index: 4, kind: input, shape index: {}]
  %s5 = inlined_call_operand.vmem [shape: bf16[16,16], index: 5, kind: output, shape index: {}]
  %s6 = sld [smem:[#allocation0]]
  $region38: #{gat_forward.2} parent=0
    _
  %s8 = ssub.s32 1, %s6
  %s9 = scalar_select 0, %s8, %s6
  // Predicated region
  $region2: #{gat_forward.2} parent=0 // pred_check
    _
  $region3: #{gat_forward.2} parent=0 // pred_check_branch
    %11 = sbr.rel (0) target = $region5
  $region4: #{gat_forward.2} parent=0 // pred_region
    _
  $region5: #{gat_forward.2} parent=0 // pred_fallthru
    _
  // Predicated region
  $region6: #{gat_forward.2} parent=0 // pred_check
    _
  $region7: #{gat_forward.2} parent=0 // pred_check_branch
    %13 = sbr.rel (0) target = $region9
  $region8: #{gat_forward.2} parent=0 // pred_region
    _
  $region9: #{gat_forward.2} parent=0 // pred_fallthru
    _
  // Predicated region
  $region10: #{gat_forward.2} parent=0 // pred_check
    _
  $region11: #{gat_forward.2} parent=0 // pred_check_branch
    %15 = sbr.rel (0) target = $region13
  $region12: #{gat_forward.2} parent=0 // pred_region
    _
  $region13: #{gat_forward.2} parent=0 // pred_fallthru
    _
  // Predicated region
  $region14: #{gat_forward.2} parent=0 // pred_check
    _
  $region15: #{gat_forward.2} parent=0 // pred_check_branch
    %17 = sbr.rel (0) target = $region17
  $region16: #{gat_forward.2} parent=0 // pred_region
    _
  $region17: #{gat_forward.2} parent=0 // pred_fallthru
    _
  // Predicated region
  $region18: #{gat_forward.2} parent=0 // pred_check
    _
  $region19: #{gat_forward.2} parent=0 // pred_check_branch
    %19 = sbr.rel (0) target = $region21
  $region20: #{gat_forward.2} parent=0 // pred_region
    _
  $region21: #{gat_forward.2} parent=0 // pred_fallthru
    _
  %p21 = scmp.eq.s32.totalorder 0, 0
  // Predicated region
  $region22: #{gat_forward.2} parent=0 // pred_check
    %p22 = pneg %p21
  $region23: #{gat_forward.2} parent=0 // pred_check_branch
    %24 = sbr.rel (%p22) target = $region25
  $region24: #{gat_forward.2} parent=0 // pred_region
    %vm25 = vcmask 7168
    %26 = vst.msk [vmem:[#allocation2] sm:$0xff] %vm25, -inf
    %27 = vst.msk [vmem:[#allocation2 + $0x8] sm:$0xff] %vm25, -inf
    %28 = vst.msk [vmem:[#allocation2 + $0x10] sm:$0xff] %vm25, -inf
    %29 = vst.msk [vmem:[#allocation2 + $0x18] sm:$0xff] %vm25, -inf
    %30 = vst.msk [vmem:[#allocation3] sm:$0xff] %vm25, 0.0
    %31 = vst.msk [vmem:[#allocation3 + $0x8] sm:$0xff] %vm25, 0.0
    %32 = vst.msk [vmem:[#allocation3 + $0x10] sm:$0xff] %vm25, 0.0
    %33 = vst.msk [vmem:[#allocation3 + $0x18] sm:$0xff] %vm25, 0.0
    %vm34 = vcmask 64512
    %35 = vst.msk [vmem:[#allocation4] sm:$0xff] %vm34, 0.0
    %36 = vst.msk [vmem:[#allocation4 + $0x8] sm:$0xff] %vm34, 0.0
    %37 = vst.msk [vmem:[#allocation4 + $0x10] sm:$0xff] %vm34, 0.0
    %38 = vst.msk [vmem:[#allocation4 + $0x18] sm:$0xff] %vm34, 0.0
  $region25: #{gat_forward.2} parent=0 // pred_fallthru
    _
  %v39 = vld [vmem:[%s0] sm:$0x3]
  %v40 = vld [vmem:[%s0 + $0x2] sm:$0x3]
  %v41 = vunpack.c.0.s8 %v39
  %v42 = vunpack.c.0.s8 %v40
  %v43 = vcvt.s32.f32 %v41
  %v44 = vcvt.s32.f32 %v42
  %v45 = vsub.f32 %v43, 1.0
  %v46 = vsub.f32 %v44, 1.0
  %v47 = vmul.f32 %v45, 1e+09
  %v48 = vmul.f32 %v46, 1e+09
  %v49 = vld [vmem:[%s3] sm:$0xff]
  %v50 = vld [vmem:[%s3 + $0x8] sm:$0xff]
  %v51 = vld [vmem:[%s2] sm:$0x3]
  %53 = vset.pattern.permute.xlu0 0
  %54 = vperm.xlu0 %53, %v49
  %v55 = vpop.permute.xlu0 %54
  %58 = vset.pattern.permute.xlu0 0
  %59 = vperm.xlu0 %58, %v50
  %v60 = vpop.permute.xlu0 %59
  %v62 = vlaneseq
  %v63 = vshrl.u32 %v62, 7
  %v64 = vsub.s32 0, %v63
  %v65 = vrot.slane %v51, %v64
  %v66 = vadd.f32 %v55, %v65
  %v67 = vadd.f32 %v60, %v65
  %v68 = vmul.f32 %v66, 0.2
  %v69 = vmul.f32 %v67, 0.2
  %v70 = vmax.f32 %v66, %v68
  %v71 = vmax.f32 %v67, %v69
  %v72 = vadd.f32 %v70, %v47
  %v73 = vadd.f32 %v71, %v48
  %v74 = vld [vmem:[#allocation2] sm:$0xff]
  %v75 = vld [vmem:[#allocation2 + $0x8] sm:$0xff]
  %vm76 = vcmask 130048
  %v77 = vsel %vm76, %v72, -inf
  %78 = vmax.xlane.f32.xlu0 %v77
  %v79 = vpop.xlane.xlu0 %78
  %v80 = vsel %vm76, %v73, -inf
  %81 = vmax.xlane.f32.xlu0 %v80
  %v82 = vpop.xlane.xlu0 %81
  %v83 = vmax.f32 %v74, %v79
  %v84 = vmax.f32 %v75, %v82
  %v85 = vsub.f32 %v74, %v83
  %v86 = vsub.f32 %v75, %v84
  %v87 = vmul.f32 %v85, 1.442695
  %v88 = vpow.pop %v87
  %v89 = vmul.f32 %v86, 1.442695
  %v90 = vpow.pop %v89
  %92 = vset.pattern.permute.xlu0 0
  %93 = vperm.xlu0 %92, %v83
  %v94 = vpop.permute.xlu0 %93
  %97 = vset.pattern.permute.xlu0 0
  %98 = vperm.xlu0 %97, %v84
  %v99 = vpop.permute.xlu0 %98
  %v101 = vsub.f32 %v72, %v94
  %v102 = vsub.f32 %v73, %v99
  %v103 = vmul.f32 %v101, 1.442695
  %v104 = vpow.pop %v103
  %v105 = vmul.f32 %v102, 1.442695
  %v106 = vpow.pop %v105
  %v107 = vld [vmem:[#allocation3] sm:$0xff]
  %v108 = vld [vmem:[#allocation3 + $0x8] sm:$0xff]
  %v109 = vmul.f32 %v88, %v107
  %v110 = vmul.f32 %v90, %v108
  %v111 = vsel %vm76, %v104, 0.0
  %112 = vadd.xlane.f32.xlu0 %v111
  %v113 = vpop.xlane.xlu0 %112
  %v114 = vsel %vm76, %v106, 0.0
  %115 = vadd.xlane.f32.xlu0 %v114
  %v116 = vpop.xlane.xlu0 %115
  %v117 = vadd.f32 %v109, %v113
  %v118 = vadd.f32 %v110, %v116
  %vm119 = vcmask 7168
  %120 = vst.msk [vmem:[#allocation3] sm:$0xff] %vm119, %v117
  %121 = vst.msk [vmem:[#allocation3 + $0x8] sm:$0xff] %vm119, %v118
  %v122 = vld [vmem:[#allocation4] sm:$0xff]
  %v123 = vld [vmem:[#allocation4 + $0x8] sm:$0xff]
  %125 = vset.pattern.permute.xlu0 0
  %126 = vperm.xlu0 %125, %v88
  %v127 = vpop.permute.xlu0 %126
  %130 = vset.pattern.permute.xlu0 0
  %131 = vperm.xlu0 %130, %v90
  %v132 = vpop.permute.xlu0 %131
  %v134 = vmul.f32 %v127, %v122
  %v135 = vmul.f32 %v132, %v123
  %v136 = vpack.c.bf16 %v106, %v104
  %v137 = vld [vmem:[%s1] sm:$0xf]
  %v138 = vld [vmem:[%s1 + $0x4] sm:$0xf]
  %v141 = vunpack.c.l.b16 %v137
  %v142 = vunpack.c.l.b16 %v138
  %v143 = vpack.c.b16 %v142, %v141
  %v146 = vsel %vm76, %v136, 0
  %148 = vmatprep.subr.bf16.mxu0 0
  %149 = vmatpush1.bf16.msra.mxu0 0
  %150 = vmatprep.subr.bf16.mxu0 0
  %151 = vmatpush1.bf16.msra.mxu0 0
  %152 = vmatprep.subr.bf16.mxu0 0
  %153 = vmatpush1.bf16.msra.mxu0 0
  %154 = vmatprep.subr.bf16.mxu0 0
  %155 = vmatpush1.bf16.msra.mxu0 0
  %156 = vmatprep.subr.bf16.mxu0 0
  %157 = vmatpush1.bf16.msra.mxu0 0
  %158 = vmatprep.subr.bf16.mxu0 0
  %159 = vmatpush1.bf16.msra.mxu0 0
  %160 = vmatprep.subr.bf16.mxu0 0
  %161 = vmatpush1.bf16.msra.mxu0 0
  %162 = vmatprep.subr.bf16.mxu0 0
  %163 = vmatpush1.bf16.msra.mxu0 %v143
  %164 = vmatprep.subr.bf16.mxu0 0
  %165 = vmatpush2.bf16.msra.mxu0 0
  %166 = vmatprep.subr.bf16.mxu0 0
  %167 = vmatpush2.bf16.msra.mxu0 0
  %168 = vmatprep.subr.bf16.mxu0 0
  %169 = vmatpush2.bf16.msra.mxu0 0
  %170 = vmatprep.subr.bf16.mxu0 0
  %171 = vmatpush2.bf16.msra.mxu0 0
  %172 = vmatprep.subr.bf16.mxu0 0
  %173 = vmatpush2.bf16.msra.mxu0 0
  %174 = vmatprep.subr.bf16.mxu0 0
  %175 = vmatpush2.bf16.msra.mxu0 0
  %176 = vmatprep.subr.bf16.mxu0 0
  %177 = vmatpush2.bf16.msra.mxu0 0
  %178 = vmatprep.subr.bf16.mxu0 0
  %179 = vmatpush2.bf16.msra.mxu0 0
  %180 = vmatprep.mubr.bf16.mxu0 0
  %181 = vmatmul.mubr.bf16.gmra.mxu0 %v146
  %v182 = vpop.f32.mrf.mxu0
  %v183 = vadd.f32 0.0, %v182
  %v184 = vpop.f32.mrf.mxu0
  %v185 = vpop.f32.mrf.mxu0
  %v186 = vadd.f32 0.0, %v185
  %v187 = vpop.f32.mrf.mxu0
  %188 = vdwg.mxu0
  %v189 = vadd.f32 %v134, %v183
  %v190 = vadd.f32 %v135, %v186
  %vm191 = vcmask 64512
  %192 = vst.msk [vmem:[#allocation4] sm:$0xff] %vm191, %v189
  %193 = vst.msk [vmem:[#allocation4 + $0x8] sm:$0xff] %vm191, %v190
  %194 = vst.msk [vmem:[#allocation2] sm:$0xff] %vm119, %v83
  %195 = vst.msk [vmem:[#allocation2 + $0x8] sm:$0xff] %vm119, %v84
  %196 = vset.pattern.permute.xlu0 1
  %197 = vperm.xlu0 %196, %v49
  %v198 = vpop.permute.xlu0 %197
  %200 = vset.pattern.permute.xlu0 1
  %201 = vperm.xlu0 %200, %v50
  %v202 = vpop.permute.xlu0 %201
  %v204 = vlaneseq
  %v205 = vshrl.u32 %v204, 7
  %v206 = vsub.s32 1, %v205
  %v207 = vrot.slane %v51, %v206
  %v208 = vadd.f32 %v198, %v207
  %v209 = vadd.f32 %v202, %v207
  %v210 = vmul.f32 %v208, 0.2
  %v211 = vmul.f32 %v209, 0.2
  %v212 = vmax.f32 %v208, %v210
  %v213 = vmax.f32 %v209, %v211
  %v214 = vadd.f32 %v212, %v47
  %v215 = vadd.f32 %v213, %v48
  %s216 = scalar_lea.vmem [#allocation2], 16
  %v217 = vld [vmem:[%s216] sm:$0xff]
  %v218 = vld [vmem:[%s216 + $0x8] sm:$0xff]
  %v219 = vsel %vm76, %v214, -inf
  %220 = vmax.xlane.f32.xlu0 %v219
  %v221 = vpop.xlane.xlu0 %220
  %v222 = vsel %vm76, %v215, -inf
  %223 = vmax.xlane.f32.xlu0 %v222
  %v224 = vpop.xlane.xlu0 %223
  %v225 = vmax.f32 %v217, %v221
  %v226 = vmax.f32 %v218, %v224
  %v227 = vsub.f32 %v217, %v225
  %v228 = vsub.f32 %v218, %v226
  %v229 = vmul.f32 %v227, 1.442695
  %v230 = vpow.pop %v229
  %v231 = vmul.f32 %v228, 1.442695
  %v232 = vpow.pop %v231
  %234 = vset.pattern.permute.xlu0 0
  %235 = vperm.xlu0 %234, %v225
  %v236 = vpop.permute.xlu0 %235
  %239 = vset.pattern.permute.xlu0 0
  %240 = vperm.xlu0 %239, %v226
  %v241 = vpop.permute.xlu0 %240
  %v243 = vsub.f32 %v214, %v236
  %v244 = vsub.f32 %v215, %v241
  %v245 = vmul.f32 %v243, 1.442695
  %v246 = vpow.pop %v245
  %v247 = vmul.f32 %v244, 1.442695
  %v248 = vpow.pop %v247
  %s249 = scalar_lea.vmem [#allocation3], 16
  %v250 = vld [vmem:[%s249] sm:$0xff]
  %v251 = vld [vmem:[%s249 + $0x8] sm:$0xff]
  %v252 = vmul.f32 %v230, %v250
  %v253 = vmul.f32 %v232, %v251
  %v254 = vsel %vm76, %v246, 0.0
  %255 = vadd.xlane.f32.xlu0 %v254
  %v256 = vpop.xlane.xlu0 %255
  %v257 = vsel %vm76, %v248, 0.0
  %258 = vadd.xlane.f32.xlu0 %v257
  %v259 = vpop.xlane.xlu0 %258
  %v260 = vadd.f32 %v252, %v256
  %v261 = vadd.f32 %v253, %v259
  %262 = vst.msk [vmem:[%s249] sm:$0xff] %vm119, %v260
  %263 = vst.msk [vmem:[%s249 + $0x8] sm:$0xff] %vm119, %v261
  %s264 = scalar_lea.vmem [#allocation4], 16
  %v265 = vld [vmem:[%s264] sm:$0xff]
  %v266 = vld [vmem:[%s264 + $0x8] sm:$0xff]
  %268 = vset.pattern.permute.xlu0 0
  %269 = vperm.xlu0 %268, %v230
  %v270 = vpop.permute.xlu0 %269
  %273 = vset.pattern.permute.xlu0 0
  %274 = vperm.xlu0 %273, %v232
  %v275 = vpop.permute.xlu0 %274
  %v277 = vmul.f32 %v270, %v265
  %v278 = vmul.f32 %v275, %v266
  %v279 = vpack.c.bf16 %v248, %v246
  %s280 = scalar_lea.vmem %s1, 8
  %v281 = vld [vmem:[%s280] sm:$0xf]
  %v282 = vld [vmem:[%s280 + $0x4] sm:$0xf]
  %v285 = vunpack.c.l.b16 %v281
  %v286 = vunpack.c.l.b16 %v282
  %v287 = vpack.c.b16 %v286, %v285
  %v290 = vsel %vm76, %v279, 0
  %292 = vmatprep.subr.bf16.mxu0 0
  %293 = vmatpush1.bf16.msra.mxu0 0
  %294 = vmatprep.subr.bf16.mxu0 0
  %295 = vmatpush1.bf16.msra.mxu0 0
  %296 = vmatprep.subr.bf16.mxu0 0
  %297 = vmatpush1.bf16.msra.mxu0 0
  %298 = vmatprep.subr.bf16.mxu0 0
  %299 = vmatpush1.bf16.msra.mxu0 0
  %300 = vmatprep.subr.bf16.mxu0 0
  %301 = vmatpush1.bf16.msra.mxu0 0
  %302 = vmatprep.subr.bf16.mxu0 0
  %303 = vmatpush1.bf16.msra.mxu0 0
  %304 = vmatprep.subr.bf16.mxu0 0
  %305 = vmatpush1.bf16.msra.mxu0 0
  %306 = vmatprep.subr.bf16.mxu0 0
  %307 = vmatpush1.bf16.msra.mxu0 %v287
  %308 = vmatprep.subr.bf16.mxu0 0
  %309 = vmatpush2.bf16.msra.mxu0 0
  %310 = vmatprep.subr.bf16.mxu0 0
  %311 = vmatpush2.bf16.msra.mxu0 0
  %312 = vmatprep.subr.bf16.mxu0 0
  %313 = vmatpush2.bf16.msra.mxu0 0
  %314 = vmatprep.subr.bf16.mxu0 0
  %315 = vmatpush2.bf16.msra.mxu0 0
  %316 = vmatprep.subr.bf16.mxu0 0
  %317 = vmatpush2.bf16.msra.mxu0 0
  %318 = vmatprep.subr.bf16.mxu0 0
  %319 = vmatpush2.bf16.msra.mxu0 0
  %320 = vmatprep.subr.bf16.mxu0 0
  %321 = vmatpush2.bf16.msra.mxu0 0
  %322 = vmatprep.subr.bf16.mxu0 0
  %323 = vmatpush2.bf16.msra.mxu0 0
  %324 = vmatprep.mubr.bf16.mxu0 0
  %325 = vmatmul.mubr.bf16.gmra.mxu0 %v290
  %v326 = vpop.f32.mrf.mxu0
  %v327 = vadd.f32 0.0, %v326
  %v328 = vpop.f32.mrf.mxu0
  %v329 = vpop.f32.mrf.mxu0
  %v330 = vadd.f32 0.0, %v329
  %v331 = vpop.f32.mrf.mxu0
  %332 = vdwg.mxu0
  %v333 = vadd.f32 %v277, %v327
  %v334 = vadd.f32 %v278, %v330
  %335 = vst.msk [vmem:[%s264] sm:$0xff] %vm191, %v333
  %336 = vst.msk [vmem:[%s264 + $0x8] sm:$0xff] %vm191, %v334
  %337 = vst.msk [vmem:[%s216] sm:$0xff] %vm119, %v225
  %338 = vst.msk [vmem:[%s216 + $0x8] sm:$0xff] %vm119, %v226
  // Predicated region
  $region26: #{gat_forward.2} parent=0 // pred_check
    %p339 = pneg %p21
  $region27: #{gat_forward.2} parent=0 // pred_check_branch
    %341 = sbr.rel (%p339) target = $region29
  $region28: #{gat_forward.2} parent=0 // pred_region
    %v342 = vld [vmem:[#allocation3] sm:$0xff]
    %v343 = vld [vmem:[#allocation3 + $0x8] sm:$0xff]
    %v344 = vmax.f32 %v342, 1e-12
    %v345 = vmax.f32 %v343, 1e-12
    %v346 = vld [vmem:[#allocation4] sm:$0xff]
    %v347 = vld [vmem:[#allocation4 + $0x8] sm:$0xff]
    %v348 = vrcp.pop %v344
    %v349 = vrcp.pop %v345
    %351 = vset.pattern.permute.xlu0 0
    %352 = vperm.xlu0 %351, %v348
    %v353 = vpop.permute.xlu0 %352
    %356 = vset.pattern.permute.xlu0 0
    %357 = vperm.xlu0 %356, %v349
    %v358 = vpop.permute.xlu0 %357
    %v360 = vmul.f32 %v346, %v353
    %v361 = vmul.f32 %v347, %v358
    %v362 = vld [vmem:[%s249] sm:$0xff]
    %v363 = vld [vmem:[%s249 + $0x8] sm:$0xff]
    %v364 = vmax.f32 %v362, 1e-12
    %v365 = vmax.f32 %v363, 1e-12
    %v366 = vld [vmem:[%s264] sm:$0xff]
    %v367 = vld [vmem:[%s264 + $0x8] sm:$0xff]
    %v368 = vrcp.pop %v364
    %v369 = vrcp.pop %v365
    %371 = vset.pattern.permute.xlu0 0
    %372 = vperm.xlu0 %371, %v368
    %v373 = vpop.permute.xlu0 %372
    %376 = vset.pattern.permute.xlu0 0
    %377 = vperm.xlu0 %376, %v369
    %v378 = vpop.permute.xlu0 %377
    %v380 = vmul.f32 %v366, %v373
    %v381 = vmul.f32 %v367, %v378
    %384 = vrot.lane.b32.xlu0 %v380, 8
    %v385 = vpop.permute.xlu0 %384
    %386 = vrot.lane.b32.xlu0 %v381, 8
    %v387 = vpop.permute.xlu0 %386
    %v390 = vsel %vm191, %v360, %v385
    %v391 = vsel %vm191, %v361, %v387
    %v392 = vld [vmem:[%s4] sm:$0x1]
    %v394 = vlaneseq
    %v395 = vshrl.u32 %v394, 7
    %v396 = vsub.s32 0, %v395
    %v397 = vrot.slane %v392, %v396
    %v399 = vadd.f32 %v390, %v397
    %v400 = vadd.f32 %v391, %v397
    %vm401 = vcmp.gt.f32.partialorder %v399, 0.0
    %vm402 = vcmp.gt.f32.partialorder %v400, 0.0
    %v403 = vmul.f32 %v399, 1.442695
    %v404 = vpow.pop %v403
    %v405 = vmul.f32 %v400, 1.442695
    %v406 = vpow.pop %v405
    %v407 = vsub.f32 %v404, 1.0
    %v408 = vsub.f32 %v406, 1.0
    %v409 = vsel %vm401, %v399, %v407
    %v410 = vsel %vm402, %v400, %v408
    %v411 = vpack.c.bf16 %v410, %v409
    %v413 = vunpack.c.l.b16 %v411
    %v414 = vunpack.c.h.b16 %v411
    %v415 = vpack.c.b16 %v413, %v413
    %v416 = vpack.c.b16 %v414, %v414
    %vm419 = vcmask 125952
    %420 = vst.msk [vmem:[%s5] sm:$0xf] %vm419, %v415
    %421 = vst.msk [vmem:[%s5 + $0x4] sm:$0xf] %vm419, %v416
  $region29: #{gat_forward.2} parent=0 // pred_fallthru
    _
  // Predicated region
  $region30: #{gat_forward.2} parent=0 // pred_check
    _
  $region31: #{gat_forward.2} parent=0 // pred_check_branch
    %423 = sbr.rel (0) target = $region33
  $region32: #{gat_forward.2} parent=0 // pred_region
    _
  $region33: #{gat_forward.2} parent=0 // pred_fallthru
    _
  // Predicated region
  $region34: #{gat_forward.2} parent=0 // pred_check
    _
  $region35: #{gat_forward.2} parent=0 // pred_check_branch
    %425 = sbr.rel (0) target = $region37
  $region36: #{gat_forward.2} parent=0 // pred_region
    _
  $region37: #{gat_forward.2} parent=0 // pred_fallthru
    _

// kernel: gat_forward.3
$region0: #{gat_forward.3}
  #allocation0 [shape = 'u32[]', space=smem, size = 0x4, offset = 0x4, fixed_abs, tag = 'smem constant byte address 0x4 - core index']
  #allocation1 [shape = 'u32[144,128]{1,0:T(1,128)}', space=vmem, size = 0x12000, scoped, tag = 'internal scratch']
  #allocation2 [shape = 'f32[1,16,1]{2,1,0:T(8,128)}', space=vmem, size = 0x2000, scoped, tag = 'scratch operand']
  #allocation3 [shape = 'f32[1,16,1]{2,1,0:T(8,128)}', space=vmem, size = 0x2000, scoped, tag = 'scratch operand']
  #allocation4 [shape = 'f32[1,16,4]{2,1,0:T(8,128)}', space=vmem, size = 0x2000, scoped, tag = 'scratch operand']
  %s0 = inlined_call_operand.vmem [shape: s8[16,16], index: 0, kind: input, shape index: {}]
  %s1 = inlined_call_operand.vmem [shape: bf16[1,16,4], index: 1, kind: input, shape index: {}]
  %s2 = inlined_call_operand.vmem [shape: f32[1,16], index: 2, kind: input, shape index: {}]
  %s3 = inlined_call_operand.vmem [shape: f32[16,1], index: 3, kind: input, shape index: {}]
  %s4 = inlined_call_operand.vmem [shape: f32[1,4], index: 4, kind: input, shape index: {}]
  %s5 = inlined_call_operand.vmem [shape: f32[16,4], index: 5, kind: output, shape index: {}]
  %s6 = sld [smem:[#allocation0]]
  $region38: #{gat_forward.3} parent=0
    _
  %s8 = ssub.s32 1, %s6
  %s9 = scalar_select 0, %s8, %s6
  // Predicated region
  $region2: #{gat_forward.3} parent=0 // pred_check
    _
  $region3: #{gat_forward.3} parent=0 // pred_check_branch
    %11 = sbr.rel (0) target = $region5
  $region4: #{gat_forward.3} parent=0 // pred_region
    _
  $region5: #{gat_forward.3} parent=0 // pred_fallthru
    _
  // Predicated region
  $region6: #{gat_forward.3} parent=0 // pred_check
    _
  $region7: #{gat_forward.3} parent=0 // pred_check_branch
    %13 = sbr.rel (0) target = $region9
  $region8: #{gat_forward.3} parent=0 // pred_region
    _
  $region9: #{gat_forward.3} parent=0 // pred_fallthru
    _
  // Predicated region
  $region10: #{gat_forward.3} parent=0 // pred_check
    _
  $region11: #{gat_forward.3} parent=0 // pred_check_branch
    %15 = sbr.rel (0) target = $region13
  $region12: #{gat_forward.3} parent=0 // pred_region
    _
  $region13: #{gat_forward.3} parent=0 // pred_fallthru
    _
  // Predicated region
  $region14: #{gat_forward.3} parent=0 // pred_check
    _
  $region15: #{gat_forward.3} parent=0 // pred_check_branch
    %17 = sbr.rel (0) target = $region17
  $region16: #{gat_forward.3} parent=0 // pred_region
    _
  $region17: #{gat_forward.3} parent=0 // pred_fallthru
    _
  // Predicated region
  $region18: #{gat_forward.3} parent=0 // pred_check
    _
  $region19: #{gat_forward.3} parent=0 // pred_check_branch
    %19 = sbr.rel (0) target = $region21
  $region20: #{gat_forward.3} parent=0 // pred_region
    _
  $region21: #{gat_forward.3} parent=0 // pred_fallthru
    _
  %p21 = scmp.eq.s32.totalorder 0, 0
  // Predicated region
  $region22: #{gat_forward.3} parent=0 // pred_check
    %p22 = pneg %p21
  $region23: #{gat_forward.3} parent=0 // pred_check_branch
    %24 = sbr.rel (%p22) target = $region25
  $region24: #{gat_forward.3} parent=0 // pred_region
    %vm25 = vcmask 7168
    %26 = vst.msk [vmem:[#allocation2] sm:$0xff] %vm25, -inf
    %27 = vst.msk [vmem:[#allocation2 + $0x8] sm:$0xff] %vm25, -inf
    %28 = vst.msk [vmem:[#allocation3] sm:$0xff] %vm25, 0.0
    %29 = vst.msk [vmem:[#allocation3 + $0x8] sm:$0xff] %vm25, 0.0
    %vm30 = vcmask 31744
    %31 = vst.msk [vmem:[#allocation4] sm:$0xff] %vm30, 0.0
    %32 = vst.msk [vmem:[#allocation4 + $0x8] sm:$0xff] %vm30, 0.0
  $region25: #{gat_forward.3} parent=0 // pred_fallthru
    _
  %v33 = vld [vmem:[%s0] sm:$0x3]
  %v34 = vld [vmem:[%s0 + $0x2] sm:$0x3]
  %v35 = vunpack.c.0.s8 %v33
  %v36 = vunpack.c.0.s8 %v34
  %v37 = vcvt.s32.f32 %v35
  %v38 = vcvt.s32.f32 %v36
  %v39 = vsub.f32 %v37, 1.0
  %v40 = vsub.f32 %v38, 1.0
  %v41 = vmul.f32 %v39, 1e+09
  %v42 = vmul.f32 %v40, 1e+09
  %v43 = vld [vmem:[%s3] sm:$0xff]
  %v44 = vld [vmem:[%s3 + $0x8] sm:$0xff]
  %v45 = vld [vmem:[%s2] sm:$0x1]
  %47 = vset.pattern.permute.xlu0 0
  %48 = vperm.xlu0 %47, %v43
  %v49 = vpop.permute.xlu0 %48
  %52 = vset.pattern.permute.xlu0 0
  %53 = vperm.xlu0 %52, %v44
  %v54 = vpop.permute.xlu0 %53
  %v57 = vlaneseq
  %v58 = vshrl.u32 %v57, 7
  %v59 = vsub.s32 0, %v58
  %v60 = vrot.slane %v45, %v59
  %v62 = vadd.f32 %v49, %v60
  %v63 = vadd.f32 %v54, %v60
  %v64 = vmul.f32 %v62, 0.2
  %v65 = vmul.f32 %v63, 0.2
  %v66 = vmax.f32 %v62, %v64
  %v67 = vmax.f32 %v63, %v65
  %v68 = vadd.f32 %v66, %v41
  %v69 = vadd.f32 %v67, %v42
  %v70 = vld [vmem:[#allocation2] sm:$0xff]
  %v71 = vld [vmem:[#allocation2 + $0x8] sm:$0xff]
  %vm72 = vcmask 130048
  %v73 = vsel %vm72, %v68, -inf
  %74 = vmax.xlane.f32.xlu0 %v73
  %v75 = vpop.xlane.xlu0 %74
  %v76 = vsel %vm72, %v69, -inf
  %77 = vmax.xlane.f32.xlu0 %v76
  %v78 = vpop.xlane.xlu0 %77
  %v79 = vmax.f32 %v70, %v75
  %v80 = vmax.f32 %v71, %v78
  %v81 = vsub.f32 %v70, %v79
  %v82 = vsub.f32 %v71, %v80
  %v83 = vmul.f32 %v81, 1.442695
  %v84 = vpow.pop %v83
  %v85 = vmul.f32 %v82, 1.442695
  %v86 = vpow.pop %v85
  %88 = vset.pattern.permute.xlu0 0
  %89 = vperm.xlu0 %88, %v79
  %v90 = vpop.permute.xlu0 %89
  %93 = vset.pattern.permute.xlu0 0
  %94 = vperm.xlu0 %93, %v80
  %v95 = vpop.permute.xlu0 %94
  %v97 = vsub.f32 %v68, %v90
  %v98 = vsub.f32 %v69, %v95
  %v99 = vmul.f32 %v97, 1.442695
  %v100 = vpow.pop %v99
  %v101 = vmul.f32 %v98, 1.442695
  %v102 = vpow.pop %v101
  %v103 = vld [vmem:[#allocation3] sm:$0xff]
  %v104 = vld [vmem:[#allocation3 + $0x8] sm:$0xff]
  %v105 = vmul.f32 %v84, %v103
  %v106 = vmul.f32 %v86, %v104
  %v107 = vsel %vm72, %v100, 0.0
  %108 = vadd.xlane.f32.xlu0 %v107
  %v109 = vpop.xlane.xlu0 %108
  %v110 = vsel %vm72, %v102, 0.0
  %111 = vadd.xlane.f32.xlu0 %v110
  %v112 = vpop.xlane.xlu0 %111
  %v113 = vadd.f32 %v105, %v109
  %v114 = vadd.f32 %v106, %v112
  %vm115 = vcmask 7168
  %116 = vst.msk [vmem:[#allocation3] sm:$0xff] %vm115, %v113
  %117 = vst.msk [vmem:[#allocation3 + $0x8] sm:$0xff] %vm115, %v114
  %v118 = vld [vmem:[#allocation4] sm:$0xff]
  %v119 = vld [vmem:[#allocation4 + $0x8] sm:$0xff]
  %121 = vset.pattern.permute.xlu0 0
  %122 = vperm.xlu0 %121, %v84
  %v123 = vpop.permute.xlu0 %122
  %126 = vset.pattern.permute.xlu0 0
  %127 = vperm.xlu0 %126, %v86
  %v128 = vpop.permute.xlu0 %127
  %v130 = vmul.f32 %v123, %v118
  %v131 = vmul.f32 %v128, %v119
  %v132 = vpack.c.bf16 %v102, %v100
  %v133 = vld [vmem:[%s1] sm:$0xf]
  %v134 = vld [vmem:[%s1 + $0x4] sm:$0xf]
  %v137 = vunpack.c.l.b16 %v133
  %v138 = vunpack.c.l.b16 %v134
  %v139 = vpack.c.b16 %v138, %v137
  %v142 = vsel %vm72, %v132, 0
  %144 = vmatprep.subr.bf16.mxu0 0
  %145 = vmatpush1.bf16.msra.mxu0 0
  %146 = vmatprep.subr.bf16.mxu0 0
  %147 = vmatpush1.bf16.msra.mxu0 0
  %148 = vmatprep.subr.bf16.mxu0 0
  %149 = vmatpush1.bf16.msra.mxu0 0
  %150 = vmatprep.subr.bf16.mxu0 0
  %151 = vmatpush1.bf16.msra.mxu0 0
  %152 = vmatprep.subr.bf16.mxu0 0
  %153 = vmatpush1.bf16.msra.mxu0 0
  %154 = vmatprep.subr.bf16.mxu0 0
  %155 = vmatpush1.bf16.msra.mxu0 0
  %156 = vmatprep.subr.bf16.mxu0 0
  %157 = vmatpush1.bf16.msra.mxu0 0
  %158 = vmatprep.subr.bf16.mxu0 0
  %159 = vmatpush1.bf16.msra.mxu0 %v139
  %160 = vmatprep.subr.bf16.mxu0 0
  %161 = vmatpush2.bf16.msra.mxu0 0
  %162 = vmatprep.subr.bf16.mxu0 0
  %163 = vmatpush2.bf16.msra.mxu0 0
  %164 = vmatprep.subr.bf16.mxu0 0
  %165 = vmatpush2.bf16.msra.mxu0 0
  %166 = vmatprep.subr.bf16.mxu0 0
  %167 = vmatpush2.bf16.msra.mxu0 0
  %168 = vmatprep.subr.bf16.mxu0 0
  %169 = vmatpush2.bf16.msra.mxu0 0
  %170 = vmatprep.subr.bf16.mxu0 0
  %171 = vmatpush2.bf16.msra.mxu0 0
  %172 = vmatprep.subr.bf16.mxu0 0
  %173 = vmatpush2.bf16.msra.mxu0 0
  %174 = vmatprep.subr.bf16.mxu0 0
  %175 = vmatpush2.bf16.msra.mxu0 0
  %176 = vmatprep.mubr.bf16.mxu0 0
  %177 = vmatmul.mubr.bf16.gmra.mxu0 %v142
  %v178 = vpop.f32.mrf.mxu0
  %v179 = vadd.f32 0.0, %v178
  %v180 = vpop.f32.mrf.mxu0
  %v181 = vpop.f32.mrf.mxu0
  %v182 = vadd.f32 0.0, %v181
  %v183 = vpop.f32.mrf.mxu0
  %184 = vdwg.mxu0
  %v185 = vadd.f32 %v130, %v179
  %v186 = vadd.f32 %v131, %v182
  %vm187 = vcmask 31744
  %188 = vst.msk [vmem:[#allocation4] sm:$0xff] %vm187, %v185
  %189 = vst.msk [vmem:[#allocation4 + $0x8] sm:$0xff] %vm187, %v186
  %190 = vst.msk [vmem:[#allocation2] sm:$0xff] %vm115, %v79
  %191 = vst.msk [vmem:[#allocation2 + $0x8] sm:$0xff] %vm115, %v80
  // Predicated region
  $region26: #{gat_forward.3} parent=0 // pred_check
    %p192 = pneg %p21
  $region27: #{gat_forward.3} parent=0 // pred_check_branch
    %194 = sbr.rel (%p192) target = $region29
  $region28: #{gat_forward.3} parent=0 // pred_region
    %v195 = vld [vmem:[#allocation3] sm:$0xff]
    %v196 = vld [vmem:[#allocation3 + $0x8] sm:$0xff]
    %v197 = vmax.f32 %v195, 1e-12
    %v198 = vmax.f32 %v196, 1e-12
    %v199 = vld [vmem:[#allocation4] sm:$0xff]
    %v200 = vld [vmem:[#allocation4 + $0x8] sm:$0xff]
    %v201 = vrcp.pop %v197
    %v202 = vrcp.pop %v198
    %204 = vset.pattern.permute.xlu0 0
    %205 = vperm.xlu0 %204, %v201
    %v206 = vpop.permute.xlu0 %205
    %209 = vset.pattern.permute.xlu0 0
    %210 = vperm.xlu0 %209, %v202
    %v211 = vpop.permute.xlu0 %210
    %v213 = vmul.f32 %v199, %v206
    %v214 = vmul.f32 %v200, %v211
    %v215 = vld [vmem:[%s4] sm:$0x1]
    %v217 = vlaneseq
    %v218 = vshrl.u32 %v217, 7
    %v219 = vsub.s32 0, %v218
    %v220 = vrot.slane %v215, %v219
    %v222 = vadd.f32 %v213, %v220
    %v223 = vadd.f32 %v214, %v220
    %v224 = vsel %vm187, %v222, -inf
    %225 = vmax.xlane.f32.xlu0 %v224
    %v226 = vpop.xlane.xlu0 %225
    %v227 = vsel %vm187, %v223, -inf
    %228 = vmax.xlane.f32.xlu0 %v227
    %v229 = vpop.xlane.xlu0 %228
    %v230 = vsub.f32 %v222, %v226
    %v231 = vsub.f32 %v223, %v229
    %v232 = vmul.f32 %v230, 1.442695
    %v233 = vpow.pop %v232
    %v234 = vmul.f32 %v231, 1.442695
    %v235 = vpow.pop %v234
    %v236 = vsel %vm187, %v233, 0.0
    %237 = vadd.xlane.f32.xlu0 %v236
    %v238 = vpop.xlane.xlu0 %237
    %v239 = vsel %vm187, %v235, 0.0
    %240 = vadd.xlane.f32.xlu0 %v239
    %v241 = vpop.xlane.xlu0 %240
    %v242 = vlog2.pop %v238
    %v243 = vmul.f32 %v242, 0.6931472
    %v244 = vlog2.pop %v241
    %v245 = vmul.f32 %v244, 0.6931472
    %v246 = vsub.f32 %v230, %v243
    %v247 = vsub.f32 %v231, %v245
    %248 = vst.msk [vmem:[%s5] sm:$0xff] %vm187, %v246
    %249 = vst.msk [vmem:[%s5 + $0x8] sm:$0xff] %vm187, %v247
  $region29: #{gat_forward.3} parent=0 // pred_fallthru
    _
  // Predicated region
  $region30: #{gat_forward.3} parent=0 // pred_check
    _
  $region31: #{gat_forward.3} parent=0 // pred_check_branch
    %251 = sbr.rel (0) target = $region33
  $region32: #{gat_forward.3} parent=0 // pred_region
    _
  $region33: #{gat_forward.3} parent=0 // pred_fallthru
    _
  // Predicated region
  $region34: #{gat_forward.3} parent=0 // pred_check
    _
  $region35: #{gat_forward.3} parent=0 // pred_check_branch
    %253 = sbr.rel (0) target = $region37
  $region36: #{gat_forward.3} parent=0 // pred_region
    _
  $region37: #{gat_forward.3} parent=0 // pred_fallthru
    _

</llo_original>
